<compile_context>
chip_gen: v7x
topology: tpu7x:2x2x1
jax: 0.10.0
libtpu: 0.0.40
codegen_flags: <defaults>
</compile_context>

<pallas_src>
import functools

import jax
import jax.numpy as jnp
from jax.experimental import pallas as pl
from jax.experimental.pallas import tpu as pltpu

_LANES = 128
_SUBLANES = 8
# ~2 MiB per input per grid step.
_TARGET_BLOCK_BYTES = 2 * 1024 * 1024


def _round_up(x, m):
    return ((x + m - 1) // m) * m


def _rmse_partial_kernel(x_ref, y_ref, o_ref, *, total_rows, block_rows,
                         blocks_total, steps_per_split):
    c = pl.program_id(0)  # split index ("parallel": shards across TCs on v7x)
    i = pl.program_id(1)  # streaming step within the split ("arbitrary")

    @pl.when(i == 0)
    def _init():
        o_ref[...] = jnp.zeros_like(o_ref)

    d = x_ref[...].astype(jnp.float32) - y_ref[...].astype(jnp.float32)
    d2 = d * d

    # Intended (unclamped) row-block index of this step.  The index_map clamps
    # the actual DMA to stay in bounds; steps whose intended block touches or
    # passes the array edge go through the masked path below.
    b = c * steps_per_split + i
    needs_mask = b >= (blocks_total - 1)

    @pl.when(jnp.logical_not(needs_mask))
    def _accumulate_plain():
        o_ref[...] += d2.reshape(-1, _SUBLANES, _LANES).sum(axis=0)[None]

    @pl.when(needs_mask)
    def _accumulate_masked():
        # Covers (a) the last, partial block whose out-of-range rows are
        # undefined and (b) fully redundant steps whose DMA was clamped.
        row = jax.lax.broadcasted_iota(jnp.int32, d2.shape, 0) + b * block_rows
        d2m = jnp.where(row < total_rows, d2, jnp.float32(0.0))
        o_ref[...] += d2m.reshape(-1, _SUBLANES, _LANES).sum(axis=0)[None]


def rmse(x, y):
    assert x.shape == y.shape, "input and target must have the same shape"
    count = x.size  # nn.MSELoss default reduction='mean'
    assert count > 0

    # Flatten in native dtype (kernel upcasts to f32 on the fly).
    xf = jnp.ravel(x)
    yf = jnp.ravel(y)

    rows = pl.cdiv(count, _LANES)
    rem = count % _LANES
    if rem:
        # Minimal tail pad (<= 127 elems); padded entries are zero in BOTH
        # arrays so (x - y)^2 == 0 there.
        pad = _LANES - rem
        xf = jnp.pad(xf, (0, pad))
        yf = jnp.pad(yf, (0, pad))
    xf = xf.reshape(rows, _LANES)
    yf = yf.reshape(rows, _LANES)

    # Block rows: ~2 MiB per input per step regardless of dtype; multiple of
    # 32 keeps any sub-32-bit dtype tiling legal and the (-1, 8, 128) reshape
    # exact.  Never much larger than the array itself.
    itemsize = jnp.dtype(x.dtype).itemsize
    target_rows = max(32, _TARGET_BLOCK_BYTES // (_LANES * itemsize))
    block_rows = min(target_rows, _round_up(rows, 32))

    blocks_total = pl.cdiv(rows, block_rows)
    # Split the row range in two for v7x's 2 TensorCores (one partial sum per
    # split, combined in the wrapper).  Only split when the (at most one)
    # clamped redundant step stays a small fraction of the total traffic.
    if blocks_total >= 2 and (blocks_total % 2 == 0 or blocks_total >= 8):
        num_splits = 2
    else:
        num_splits = 1
    steps_per_split = pl.cdiv(blocks_total, num_splits)

    def in_index_map(c, i):
        b = c * steps_per_split + i
        return (jnp.minimum(b, blocks_total - 1), 0)

    kernel = functools.partial(
        _rmse_partial_kernel,
        total_rows=rows,
        block_rows=block_rows,
        blocks_total=blocks_total,
        steps_per_split=steps_per_split,
    )

    partials = pl.pallas_call(
        kernel,
        out_shape=jax.ShapeDtypeStruct(
            (num_splits, _SUBLANES, _LANES), jnp.float32),
        grid_spec=pltpu.PrefetchScalarGridSpec(
            num_scalar_prefetch=0,
            grid=(num_splits, steps_per_split),
            in_specs=[
                pl.BlockSpec((block_rows, _LANES), in_index_map),
                pl.BlockSpec((block_rows, _LANES), in_index_map),
            ],
            out_specs=pl.BlockSpec((1, _SUBLANES, _LANES),
                                   lambda c, i: (c, 0, 0)),
        ),
        compiler_params=pltpu.CompilerParams(
            dimension_semantics=("parallel", "arbitrary"),
        ),
    )(xf, yf)

    return jnp.sqrt(jnp.sum(partials) / jnp.float32(count))


if __name__ == "__main__":
    key = jax.random.PRNGKey(0)
    k1, k2, k3, k4 = jax.random.split(key, 4)

    # Shapes consistent with a typical NCHW tensor pair fed to MSELoss.
    x = jax.random.normal(k1, (2, 4, 16, 16), dtype=jnp.float32)
    y = jax.random.normal(k2, (2, 4, 16, 16), dtype=jnp.float32)
    result = jax.block_until_ready(rmse(x, y))
    ref = jnp.sqrt(jnp.mean((x - y) ** 2))
    assert jnp.allclose(result, ref, rtol=1e-5, atol=1e-6), (result, ref)

    # Non-128-multiple element count (tail-pad + mask path).
    x2 = jax.random.normal(k1, (3, 5, 7, 9), dtype=jnp.float32)
    y2 = jax.random.normal(k2, (3, 5, 7, 9), dtype=jnp.float32)
    r2 = jax.block_until_ready(rmse(x2, y2))
    ref2 = jnp.sqrt(jnp.mean((x2 - y2) ** 2))
    assert jnp.allclose(r2, ref2, rtol=1e-5, atol=1e-6), (r2, ref2)

    # bf16 inputs (itemsize-scaled block, on-the-fly f32 upcast).
    x3 = jax.random.normal(k3, (4, 8, 128), dtype=jnp.float32).astype(jnp.bfloat16)
    y3 = jax.random.normal(k4, (4, 8, 128), dtype=jnp.float32).astype(jnp.bfloat16)
    r3 = jax.block_until_ready(rmse(x3, y3))
    ref3 = jnp.sqrt(jnp.mean(
        (x3.astype(jnp.float32) - y3.astype(jnp.float32)) ** 2))
    assert jnp.allclose(r3, ref3, rtol=1e-3, atol=1e-5), (r3, ref3)

    # Multi-block + dual-split + ragged path (4 row-blocks, 2 splits).
    x4 = jax.random.normal(k3, (137, 146, 100), dtype=jnp.float32)
    y4 = jax.random.normal(k4, (137, 146, 100), dtype=jnp.float32)
    r4 = jax.block_until_ready(rmse(x4, y4))
    ref4 = jnp.sqrt(jnp.mean((x4 - y4) ** 2))
    assert jnp.allclose(r4, ref4, rtol=1e-4, atol=1e-6), (r4, ref4)

    print("KERNEL_OK")
</pallas_src>

<mosaic_0001>
module attributes {stable_mosaic.version = 11 : i64} {
  func.func @_rmse_partial_kernel(%arg0: i32, %arg1: i32, %arg2: memref<32x128xf32, #tpu.memory_space<vmem>>, %arg3: memref<32x128xf32, #tpu.memory_space<vmem>>, %arg4: memref<1x8x128xf32, #tpu.memory_space<vmem>>) attributes {dimension_semantics = [#tpu.dimension_semantics<parallel>, #tpu.dimension_semantics<arbitrary>], iteration_bounds = array<i64: 1, 1>, scalar_prefetch = 0 : i64, scratch_operands = 0 : i64, tpu.core_type = #tpu.core_type<tc>, window_params = [{transform_indices = @transform_0, window_bounds = array<i64: 32, 128>}, {transform_indices = @transform_1, window_bounds = array<i64: 32, 128>}, {transform_indices = @transform_2, window_bounds = array<i64: 1, 8, 128>}]} {
    %c0_i32 = arith.constant 0 : i32
    %0 = arith.cmpi eq, %arg1, %c0_i32 : i32
    %1 = arith.extui %0 : i1 to i32
    %c0_i32_0 = arith.constant 0 : i32
    %2 = arith.cmpi ne, %1, %c0_i32_0 : i32
    scf.if %2 {
      %cst = arith.constant 0.000000e+00 : f32
      %15 = vector.broadcast %cst : f32 to vector<1x8x128xf32>
      %c0_7 = arith.constant 0 : index
      %c0_8 = arith.constant 0 : index
      %c0_9 = arith.constant 0 : index
      %16 = vector.load %arg4[%c0_7, %c0_8, %c0_9] : memref<1x8x128xf32, #tpu.memory_space<vmem>>, vector<1x8x128xf32>
      tpu.vector_store %arg4[%c0_7, %c0_8, %c0_9], %15 {strides = array<i32>} : memref<1x8x128xf32, #tpu.memory_space<vmem>>, vector<1x8x128xf32>,
    } else {
    }
    %c0 = arith.constant 0 : index
    %c0_1 = arith.constant 0 : index
    %3 = vector.load %arg2[%c0, %c0_1] : memref<32x128xf32, #tpu.memory_space<vmem>>, vector<32x128xf32>
    %c0_2 = arith.constant 0 : index
    %c0_3 = arith.constant 0 : index
    %4 = vector.load %arg3[%c0_2, %c0_3] : memref<32x128xf32, #tpu.memory_space<vmem>>, vector<32x128xf32>
    %5 = arith.subf %3, %4 : vector<32x128xf32>
    %6 = arith.mulf %5, %5 : vector<32x128xf32>
    %c1_i32 = arith.constant 1 : i32
    %7 = arith.muli %arg0, %c1_i32 : i32
    %8 = arith.addi %7, %arg1 : i32
    %c0_i32_4 = arith.constant 0 : i32
    %9 = arith.cmpi sge, %8, %c0_i32_4 : i32
    %true = arith.constant true
    %10 = arith.xori %9, %true : i1
    %11 = arith.extui %10 : i1 to i32
    %c0_i32_5 = arith.constant 0 : i32
    %12 = arith.cmpi ne, %11, %c0_i32_5 : i32
    scf.if %12 {
      %c0_7 = arith.constant 0 : index
      %c0_8 = arith.constant 0 : index
      %c0_9 = arith.constant 0 : index
      %15 = vector.load %arg4[%c0_7, %c0_8, %c0_9] : memref<1x8x128xf32, #tpu.memory_space<vmem>>, vector<1x8x128xf32>
      %16 = vector.shape_cast %6 : vector<32x128xf32> to vector<4x8x128xf32>
      %cst = arith.constant dense<0.000000e+00> : vector<8x128xf32>
      %17 = vector.multi_reduction <add>, %16, %cst [0] : vector<4x8x128xf32> to vector<8x128xf32>
      %18 = vector.shape_cast %17 : vector<8x128xf32> to vector<1x8x128xf32>
      %19 = arith.addf %15, %18 : vector<1x8x128xf32>
      %c0_10 = arith.constant 0 : index
      %c0_11 = arith.constant 0 : index
      %c0_12 = arith.constant 0 : index
      %20 = vector.load %arg4[%c0_10, %c0_11, %c0_12] : memref<1x8x128xf32, #tpu.memory_space<vmem>>, vector<1x8x128xf32>
      tpu.vector_store %arg4[%c0_10, %c0_11, %c0_12], %19 {strides = array<i32>} : memref<1x8x128xf32, #tpu.memory_space<vmem>>, vector<1x8x128xf32>,
    } else {
    }
    %13 = arith.extui %9 : i1 to i32
    %c0_i32_6 = arith.constant 0 : i32
    %14 = arith.cmpi ne, %13, %c0_i32_6 : i32
    scf.if %14 {
      %15 = tpu.iota {dimensions = array<i32: 0>} : vector<32x128xi32>
      %c32_i32 = arith.constant 32 : i32
      %16 = arith.muli %8, %c32_i32 : i32
      %17 = vector.broadcast %16 : i32 to vector<32x128xi32>
      %18 = arith.addi %15, %17 : vector<32x128xi32>
      %c16_i32 = arith.constant 16 : i32
      %19 = vector.broadcast %c16_i32 : i32 to vector<32x128xi32>
      %20 = arith.cmpi slt, %18, %19 : vector<32x128xi32>
      %cst = arith.constant 0.000000e+00 : f32
      %21 = vector.broadcast %cst : f32 to vector<32x128xf32>
      %22 = arith.select %20, %6, %21 : vector<32x128xi1>, vector<32x128xf32>
      %c0_7 = arith.constant 0 : index
      %c0_8 = arith.constant 0 : index
      %c0_9 = arith.constant 0 : index
      %23 = vector.load %arg4[%c0_7, %c0_8, %c0_9] : memref<1x8x128xf32, #tpu.memory_space<vmem>>, vector<1x8x128xf32>
      %24 = vector.shape_cast %22 : vector<32x128xf32> to vector<4x8x128xf32>
      %cst_10 = arith.constant dense<0.000000e+00> : vector<8x128xf32>
      %25 = vector.multi_reduction <add>, %24, %cst_10 [0] : vector<4x8x128xf32> to vector<8x128xf32>
      %26 = vector.shape_cast %25 : vector<8x128xf32> to vector<1x8x128xf32>
      %27 = arith.addf %23, %26 : vector<1x8x128xf32>
      %c0_11 = arith.constant 0 : index
      %c0_12 = arith.constant 0 : index
      %c0_13 = arith.constant 0 : index
      %28 = vector.load %arg4[%c0_11, %c0_12, %c0_13] : memref<1x8x128xf32, #tpu.memory_space<vmem>>, vector<1x8x128xf32>
      tpu.vector_store %arg4[%c0_11, %c0_12, %c0_13], %27 {strides = array<i32>} : memref<1x8x128xf32, #tpu.memory_space<vmem>>, vector<1x8x128xf32>,
    } else {
    }
    return
  }
  func.func @transform_0(%arg0: i32, %arg1: i32) -> (i32, i32) {
    %c1_i32 = arith.constant 1 : i32
    %0 = arith.muli %arg0, %c1_i32 : i32
    %1 = arith.addi %0, %arg1 : i32
    %c0_i32 = arith.constant 0 : i32
    %2 = arith.minsi %1, %c0_i32 : i32
    %c0_i32_0 = arith.constant 0 : i32
    %c0_i32_1 = arith.constant 0 : i32
    return %2, %c0_i32_0 : i32, i32
  }
  func.func @transform_1(%arg0: i32, %arg1: i32) -> (i32, i32) {
    %c1_i32 = arith.constant 1 : i32
    %0 = arith.muli %arg0, %c1_i32 : i32
    %1 = arith.addi %0, %arg1 : i32
    %c0_i32 = arith.constant 0 : i32
    %2 = arith.minsi %1, %c0_i32 : i32
    %c0_i32_0 = arith.constant 0 : i32
    %c0_i32_1 = arith.constant 0 : i32
    return %2, %c0_i32_0 : i32, i32
  }
  func.func @transform_2(%arg0: i32, %arg1: i32) -> (i32, i32, i32) {
    %c0_i32 = arith.constant 0 : i32
    %c0_i32_0 = arith.constant 0 : i32
    %c0_i32_1 = arith.constant 0 : i32
    return %arg0, %c0_i32, %c0_i32_0 : i32, i32, i32
  }
}

</mosaic_0001>

<llo_original>
// kernel: tpu_custom_call.1
$region0: #{tpu_custom_call.1}
  #allocation0 [shape = 'u32[]', space=smem, size = 0x4, offset = 0x4, fixed_abs, tag = 'smem constant byte address 0x4 - core index']
  #allocation1 [shape = 'u32[144,128]{1,0:T(1,128)}', space=vmem, size = 0x12000, scoped, tag = 'internal scratch']
  %s0 = inlined_call_operand.hbm [shape: f32[16,128], index: 0, kind: input, shape index: {}]
  %s1 = inlined_call_operand.hbm [shape: f32[16,128], index: 1, kind: input, shape index: {}]
  %s2 = inlined_call_operand.hbm [shape: f32[1,8,128], index: 2, kind: output, shape index: {}]
  %s3 = sld [smem:[#allocation0]]
  $region38: #{tpu_custom_call.1} parent=0
    _
  %s5 = ssub.s32 1, %s3
  %s6 = scalar_select 0, %s5, %s3
  $region1: #{tpu_custom_call.1} parent=0
    #allocation2 [shape = 'u8[16384]{0}', space=vmem, size = 0x4000, scoped, tag = 'input window, operand 0, single buffered']
    #allocation3 [shape = 's32[1]{0}', space=sflag, size = 0x4, scoped, tag = 'scoped memory for tpu_custom_call.1']
    #allocation4 [shape = 's32[1]{0}', space=sflag, size = 0x4, scoped, tag = 'scoped memory for tpu_custom_call.1']
    #allocation5 [shape = 'u8[16384]{0}', space=vmem, size = 0x4000, scoped, tag = 'input window, operand 1, single buffered']
    #allocation6 [shape = 's32[1]{0}', space=sflag, size = 0x4, scoped, tag = 'scoped memory for tpu_custom_call.1']
    #allocation7 [shape = 'u8[4096]{0}', space=vmem, size = 0x1000, scoped, tag = 'output window, operand 0, single buffered']
    %7 = vsyncpa [#allocation3], 0
    %8 = vsyncpa [#allocation6], 0
    %9 = vsyncpa [#allocation4], 0
    // Predicated region
    $region2: #{tpu_custom_call.1} parent=1 // pred_check
      _
    $region3: #{tpu_custom_call.1} parent=1 // pred_check_branch
      %11 = sbr.rel (0) target = $region5
    $region4: #{tpu_custom_call.1} parent=1 // pred_region
      %s12 = sadd.s32 0, 0
      %p13 = scmp.lt.s32.totalorder %s12, 0
      %s14 = scalar_select %p13, %s12, 0
      %s15 = smul.u32 4, %s14
      %s16 = ssub.s32 2, %s15
      %s17 = smul.u32 128, %s16
      %s19 = ssub.s32 512, %s17
      %20 = vsyncadd [#allocation3], %s19
      %p21 = scmp.ne.s32.totalorder 0, %s17
      %s22 = smul.addr %s15, 128
      %s23 = scalar_lea.hbm %s0, %s22
      %s24 = smul.u32 8, %s16
      %s25 = sshll.u32 [#allocation2], 4
      %s26 = int_to_ptr.vmem [resolvable:$true] %s25
      %s27 = sshll.u32 %s24, 4
      %31 = dma.hbm_to_vmem [thread:$0]  (%p21), %s23, %s27, %s26, [#allocation3], 128, 128, 8
    $region5: #{tpu_custom_call.1} parent=1 // pred_fallthru
      _
    // Predicated region
    $region6: #{tpu_custom_call.1} parent=1 // pred_check
      _
    $region7: #{tpu_custom_call.1} parent=1 // pred_check_branch
      %33 = sbr.rel (0) target = $region9
    $region8: #{tpu_custom_call.1} parent=1 // pred_region
      %s34 = sadd.s32 0, 0
      %p35 = scmp.lt.s32.totalorder %s34, 0
      %s36 = scalar_select %p35, %s34, 0
      %s37 = smul.u32 4, %s36
      %s38 = ssub.s32 2, %s37
      %s39 = smul.u32 128, %s38
      %s41 = ssub.s32 512, %s39
      %42 = vsyncadd [#allocation6], %s41
      %p43 = scmp.ne.s32.totalorder 0, %s39
      %s44 = smul.addr %s37, 128
      %s45 = scalar_lea.hbm %s1, %s44
      %s46 = smul.u32 8, %s38
      %s47 = sshll.u32 [#allocation5], 4
      %s48 = int_to_ptr.vmem [resolvable:$true] %s47
      %s49 = sshll.u32 %s46, 4
      %53 = dma.hbm_to_vmem [thread:$0]  (%p43), %s45, %s49, %s48, [#allocation6], 128, 128, 8
    $region9: #{tpu_custom_call.1} parent=1 // pred_fallthru
      _
    // Predicated region
    $region10: #{tpu_custom_call.1} parent=1 // pred_check
      _
    $region11: #{tpu_custom_call.1} parent=1 // pred_check_branch
      %55 = sbr.rel (0) target = $region13
    $region12: #{tpu_custom_call.1} parent=1 // pred_region
      %56 = dma.done [#allocation3], 512
    $region13: #{tpu_custom_call.1} parent=1 // pred_fallthru
      _
    // Predicated region
    $region14: #{tpu_custom_call.1} parent=1 // pred_check
      _
    $region15: #{tpu_custom_call.1} parent=1 // pred_check_branch
      %58 = sbr.rel (0) target = $region17
    $region16: #{tpu_custom_call.1} parent=1 // pred_region
      %59 = dma.done [#allocation6], 512
    $region17: #{tpu_custom_call.1} parent=1 // pred_fallthru
      _
    %s60 = sadd.s32 0, 0
    %p61 = scmp.lt.s32.totalorder %s60, 0
    %s62 = scalar_select %p61, %s60, 0
    %s63 = smul.u32 4, %s62
    %s64 = ssub.s32 2, %s63
    %s65 = smul.u32 128, %s64
    %s66 = sadd.s32 0, 0
    %p67 = scmp.lt.s32.totalorder %s66, 0
    %s68 = scalar_select %p67, %s66, 0
    %s69 = smul.u32 4, %s68
    %s70 = ssub.s32 2, %s69
    %s71 = smul.u32 128, %s70
    %p72 = scmp.eq.s32.totalorder 0, 0
    // Predicated region
    $region18: #{tpu_custom_call.1} parent=1 // pred_check
      %p73 = pneg %p72
    $region19: #{tpu_custom_call.1} parent=1 // pred_check_branch
      %75 = sbr.rel (%p73) target = $region21
    $region20: #{tpu_custom_call.1} parent=1 // pred_region
      %76 = vst [vmem:[#allocation7] sm:$0xff] 0.0
    $region21: #{tpu_custom_call.1} parent=1 // pred_fallthru
      _
    %v77 = vld [vmem:[#allocation2] sm:$0xff]
    %v78 = vld [vmem:[#allocation2 + $0x8] sm:$0xff]
    %v79 = vld [vmem:[#allocation2 + $0x10] sm:$0xff]
    %v80 = vld [vmem:[#allocation2 + $0x18] sm:$0xff]
    %v81 = vld [vmem:[#allocation5] sm:$0xff]
    %v82 = vld [vmem:[#allocation5 + $0x8] sm:$0xff]
    %v83 = vld [vmem:[#allocation5 + $0x10] sm:$0xff]
    %v84 = vld [vmem:[#allocation5 + $0x18] sm:$0xff]
    %v85 = vsub.f32 %v77, %v81
    %v86 = vsub.f32 %v78, %v82
    %v87 = vsub.f32 %v79, %v83
    %v88 = vsub.f32 %v80, %v84
    %v89 = vmul.f32 %v85, %v85
    %v90 = vmul.f32 %v86, %v86
    %v91 = vmul.f32 %v87, %v87
    %v92 = vmul.f32 %v88, %v88
    %s93 = sadd.s32 0, 0
    %p94 = scmp.ge.s32.totalorder %s93, 0
    %p95 = scmp.lt.s32.totalorder %s93, 0
    // Predicated region
    $region22: #{tpu_custom_call.1} parent=1 // pred_check
      %p96 = pneg %p95
    $region23: #{tpu_custom_call.1} parent=1 // pred_check_branch
      %98 = sbr.rel (%p96) target = $region25
    $region24: #{tpu_custom_call.1} parent=1 // pred_region
      %v99 = vld [vmem:[#allocation7] sm:$0xff]
      %v100 = vadd.f32 %v89, %v90
      %v101 = vadd.f32 %v100, %v91
      %v102 = vadd.f32 %v101, %v92
      %v103 = vadd.f32 %v99, %v102
      %104 = vst [vmem:[#allocation7] sm:$0xff] %v103
    $region25: #{tpu_custom_call.1} parent=1 // pred_fallthru
      _
    // Predicated region
    $region26: #{tpu_custom_call.1} parent=1 // pred_check
      %p105 = pneg %p94
    $region27: #{tpu_custom_call.1} parent=1 // pred_check_branch
      %107 = sbr.rel (%p105) target = $region29
    $region28: #{tpu_custom_call.1} parent=1 // pred_region
      %v108 = vlaneseq
      %v109 = vshrl.u32 %v108, 7
      %v110 = vadd.s32 %v109, 8
      %v111 = vadd.s32 %v109, 16
      %v112 = vadd.s32 %v109, 24
      %s113 = smul.u32 %s93, 32
      %v114 = vstv %s113
      %v115 = vadd.s32 %v109, %v114
      %v116 = vadd.s32 %v110, %v114
      %v117 = vadd.s32 %v111, %v114
      %v118 = vadd.s32 %v112, %v114
      %vm119 = vcmp.lt.s32.totalorder %v115, 16
      %vm120 = vcmp.lt.s32.totalorder %v116, 16
      %vm121 = vcmp.lt.s32.totalorder %v117, 16
      %vm122 = vcmp.lt.s32.totalorder %v118, 16
      %v123 = vsel %vm119, %v89, 0.0
      %v124 = vsel %vm120, %v90, 0.0
      %v125 = vsel %vm121, %v91, 0.0
      %v126 = vsel %vm122, %v92, 0.0
      %v127 = vld [vmem:[#allocation7] sm:$0xff]
      %v128 = vadd.f32 %v123, %v124
      %v129 = vadd.f32 %v128, %v125
      %v130 = vadd.f32 %v129, %v126
      %v131 = vadd.f32 %v127, %v130
      %132 = vst [vmem:[#allocation7] sm:$0xff] %v131
    $region29: #{tpu_custom_call.1} parent=1 // pred_fallthru
      _
    // Predicated region
    $region30: #{tpu_custom_call.1} parent=1 // pred_check
      _
    $region31: #{tpu_custom_call.1} parent=1 // pred_check_branch
      %134 = sbr.rel (0) target = $region33
    $region32: #{tpu_custom_call.1} parent=1 // pred_region
      %s136 = ssub.s32 128, 128
      %137 = vsyncadd [#allocation4], %s136
      %s139 = sshll.u32 [#allocation7], 4
      %s140 = int_to_ptr.vmem [resolvable:$true] %s139
      %142 = dma.vmem_to_hbm [thread:$0]  %s140, 128, %s2, [#allocation4]
    $region33: #{tpu_custom_call.1} parent=1 // pred_fallthru
      _
    // Predicated region
    $region34: #{tpu_custom_call.1} parent=1 // pred_check
      _
    $region35: #{tpu_custom_call.1} parent=1 // pred_check_branch
      %144 = sbr.rel (0) target = $region37
    $region36: #{tpu_custom_call.1} parent=1 // pred_region
      %145 = dma.done [#allocation4], 128
    $region37: #{tpu_custom_call.1} parent=1 // pred_fallthru
      _
    %146 = vsyncpa [#allocation3], 1
    %147 = vsyncpa [#allocation6], 1
    %148 = vsyncpa [#allocation4], 1

</llo_original>
